<compile_context>
chip_gen: v7x
topology: tpu7x:2x2x1
jax: 0.10.0
libtpu: 0.0.40
codegen_flags: <defaults>
</compile_context>

<pallas_src>
import functools

import jax
import jax.numpy as jnp
from jax import lax
from jax.experimental import pallas as pl
from jax.experimental.pallas import tpu as pltpu

LANES = 128                              # lane width (last dim of every vreg)
SUBLANES = 8                             # f32 sublane count
CHUNK_ROWS = 128                         # rows per fused inner-loop chunk
BLOCK_BUDGET_BYTES = 8 * 1024 * 1024     # combined bytes of both input blocks / step


def _sublane_min(dtype):
    """Minimum second-to-last block dim for this dtype's packed layout."""
    return {4: 8, 2: 16, 1: 32}.get(jnp.dtype(dtype).itemsize, 8)


def _accumulate(x_ref, t_ref, acc_ref, *, tm, chunk, masked, rows, row0):
    """One fused pass over the current (tm, 128) tile.

    Each x/t chunk is loaded from VMEM exactly once into vregs and feeds all
    three reductions (intersection, sum_x, sum_t) via vreg-resident (8, 128)
    accumulators; acc_ref is read-modify-written once per grid step.  `masked`
    is a Python bool: the masked variant is only instantiated for the final,
    partial grid step (gated by pl.when in the kernel body).
    """
    n_chunks = tm // chunk

    def fold(v):
        # (chunk, 128) -> (8, 128): layout-preserving reshape + plain vreg
        # adds on the VPU (no cross-lane XLU work in the steady state).
        return jnp.sum(v.reshape(chunk // SUBLANES, SUBLANES, LANES), axis=0)

    def body(j, carry):
        a_i, a_x, a_t = carry
        start = pl.multiple_of(j * chunk, chunk)
        x = x_ref[pl.ds(start, chunk), :].astype(jnp.float32)
        t = t_ref[pl.ds(start, chunk), :].astype(jnp.float32)
        if masked:
            # Zero rows past the end of the array (garbage region of the
            # partial last block).  Both tensors are zeroed before the
            # multiply, so no NaN/Inf garbage can leak into the sums.
            ridx = row0 + start + lax.broadcasted_iota(jnp.int32, (chunk, LANES), 0)
            valid = ridx < rows
            x = jnp.where(valid, x, 0.0)
            t = jnp.where(valid, t, 0.0)
        return (a_i + fold(x * t), a_x + fold(x), a_t + fold(t))

    zero = jnp.zeros((SUBLANES, LANES), jnp.float32)
    a_i, a_x, a_t = lax.fori_loop(0, n_chunks, body, (zero, zero, zero))
    acc_ref[0] += a_i
    acc_ref[1] += a_x
    acc_ref[2] += a_t


def _dice_sums_kernel(x_ref, t_ref, sums_ref, acc_ref, *, tm, chunk, rows, has_tail):
    i = pl.program_id(0)
    nsteps = pl.num_programs(0)

    @pl.when(i == 0)
    def _():
        acc_ref[...] = jnp.zeros_like(acc_ref)

    if has_tail:
        is_tail = i == nsteps - 1

        @pl.when(jnp.logical_not(is_tail))
        def _():
            _accumulate(x_ref, t_ref, acc_ref, tm=tm, chunk=chunk,
                        masked=False, rows=rows, row0=0)

        @pl.when(is_tail)
        def _():
            _accumulate(x_ref, t_ref, acc_ref, tm=tm, chunk=chunk,
                        masked=True, rows=rows, row0=i * tm)
    else:
        _accumulate(x_ref, t_ref, acc_ref, tm=tm, chunk=chunk,
                    masked=False, rows=rows, row0=0)

    # Single cross-lane (XLU) reduction + SMEM store, on the last step only.
    @pl.when(i == nsteps - 1)
    def _():
        sums_ref[0, 0] = jnp.sum(acc_ref[0])
        sums_ref[0, 1] = jnp.sum(acc_ref[1])
        sums_ref[0, 2] = jnp.sum(acc_ref[2])


def _dice_sums(inputs, targets, max_tm=None):
    """Returns (intersection, sum(inputs), sum(targets)) as f32 scalars."""
    x = inputs.reshape(-1)
    t = targets.reshape(-1)
    n = x.shape[0]

    min_rows = max(_sublane_min(x.dtype), _sublane_min(t.dtype))

    # Common case (n % 128 == 0, n >= one minimal tile): the reshape below is
    # a free bitcast and no extra HBM pass happens.  Only lane-ragged or tiny
    # inputs fall back to a zero-pad (zeros are neutral for all three sums).
    n_min = min_rows * LANES
    if (n % LANES != 0) or (n < n_min):
        n_pad = max(pl.cdiv(n, LANES) * LANES, n_min)
        x = jnp.pad(x, (0, n_pad - n))
        t = jnp.pad(t, (0, n_pad - n))
        n = n_pad

    rows = n // LANES                       # >= min_rows
    x2 = x.reshape(rows, LANES)
    t2 = t.reshape(rows, LANES)

    # Dtype-aware tile size: ~8 MiB combined per step for the two input
    # blocks (4 MiB each for f32+f32 -> 8192 rows; bf16 doubles the rows).
    bytes_per_row = LANES * (x.dtype.itemsize + t.dtype.itemsize)
    cap = BLOCK_BUDGET_BYTES // bytes_per_row
    cap = max(CHUNK_ROWS, (cap // CHUNK_ROWS) * CHUNK_ROWS)
    if max_tm is not None:
        cap = min(cap, max(min_rows, (max_tm // min_rows) * min_rows))

    if rows >= cap:
        tm = cap
    else:
        tm = max(min_rows, (rows // min_rows) * min_rows)
        if tm > CHUNK_ROWS:
            tm = (tm // CHUNK_ROWS) * CHUNK_ROWS   # keep the inner chunk at 128 rows

    # Largest chunk size that divides tm (tm is always a multiple of min_rows,
    # so the chosen chunk is never below the dtype's minimum sublane tile).
    for c in (CHUNK_ROWS, 64, 32, 16, 8):
        if tm % c == 0:
            chunk = c
            break

    nsteps = pl.cdiv(rows, tm)
    has_tail = (rows % tm) != 0             # only the tail step pays the mask

    kernel = functools.partial(_dice_sums_kernel, tm=tm, chunk=chunk,
                               rows=rows, has_tail=has_tail)

    sums = pl.pallas_call(
        kernel,
        out_shape=jax.ShapeDtypeStruct((1, 3), jnp.float32),
        grid_spec=pltpu.PrefetchScalarGridSpec(
            num_scalar_prefetch=0,
            grid=(nsteps,),
            in_specs=[
                pl.BlockSpec((tm, LANES), lambda i: (i, 0)),
                pl.BlockSpec((tm, LANES), lambda i: (i, 0)),
            ],
            out_specs=pl.BlockSpec((1, 3), lambda i: (0, 0),
                                   memory_space=pltpu.SMEM),
            scratch_shapes=[pltpu.VMEM((3, SUBLANES, LANES), jnp.float32)],
        ),
        compiler_params=pltpu.CompilerParams(
            dimension_semantics=("arbitrary",),
            vmem_limit_bytes=40 * 1024 * 1024,   # 16 MiB of input buffers + headroom
        ),
    )(x2, t2)

    return sums[0, 0], sums[0, 1], sums[0, 2]


def dice_loss(inputs, targets, smooth=1.0, max_tm=None):
    intersection, x_sum, t_sum = _dice_sums(inputs, targets, max_tm=max_tm)
    dice = (2.0 * intersection + smooth) / (x_sum + t_sum + smooth)
    return 1.0 - dice


def _ref_dice_loss(inputs, targets, smooth=1.0):
    x = inputs.reshape(-1).astype(jnp.float32)
    t = targets.reshape(-1).astype(jnp.float32)
    inter = jnp.sum(x * t)
    return 1.0 - (2.0 * inter + smooth) / (jnp.sum(x) + jnp.sum(t) + smooth)


if __name__ == "__main__":
    key = jax.random.PRNGKey(0)
    ks = jax.random.split(key, 10)

    # 1) Segmentation-style probabilities vs binary masks: (B=2, C=4, 16, 16).
    inputs = jax.nn.sigmoid(jax.random.normal(ks[0], (2, 4, 16, 16), jnp.float32))
    targets = (jax.random.uniform(ks[1], (2, 4, 16, 16)) > 0.5).astype(jnp.float32)
    loss = jax.block_until_ready(dice_loss(inputs, targets, smooth=1.0))
    ref = _ref_dice_loss(inputs, targets, smooth=1.0)
    assert jnp.allclose(loss, ref, atol=1e-5, rtol=1e-5), (loss, ref)

    # 2) Forced small tile (max_tm=16) on 40 rows: multi-step accumulation,
    #    masked partial tail tile (steady-state steps are unmasked).
    x2 = jax.nn.sigmoid(jax.random.normal(ks[2], (4, 10, 128), jnp.float32))
    t2 = (jax.random.uniform(ks[3], (4, 10, 128)) > 0.5).astype(jnp.float32)
    loss2 = jax.block_until_ready(dice_loss(x2, t2, smooth=1.0, max_tm=16))
    ref2 = _ref_dice_loss(x2, t2, smooth=1.0)
    assert jnp.allclose(loss2, ref2, atol=1e-5, rtol=1e-5), (loss2, ref2)

    # 3) bf16 inputs (in-kernel cast path), tm forced to the bf16 minimum of
    #    16 rows -> evenly-split multi-step grid, no tail mask.
    x3 = jax.nn.sigmoid(jax.random.normal(ks[4], (2, 16, 128), jnp.bfloat16))
    t3 = (jax.random.uniform(ks[5], (2, 16, 128)) > 0.5).astype(jnp.bfloat16)
    loss3 = jax.block_until_ready(dice_loss(x3, t3, smooth=1.0, max_tm=16))
    ref3 = _ref_dice_loss(x3, t3, smooth=1.0)
    assert jnp.allclose(loss3, ref3, atol=1e-4, rtol=1e-4), (loss3, ref3)

    # 4) Ragged size (2*3*7*11 = 462 elems) hits the zero-pad fallback path.
    x4 = jax.nn.sigmoid(jax.random.normal(ks[6], (2, 3, 7, 11), jnp.float32))
    t4 = (jax.random.uniform(ks[7], (2, 3, 7, 11)) > 0.5).astype(jnp.float32)
    loss4 = jax.block_until_ready(dice_loss(x4, t4, smooth=1.0))
    ref4 = _ref_dice_loss(x4, t4, smooth=1.0)
    assert jnp.allclose(loss4, ref4, atol=1e-5, rtol=1e-5), (loss4, ref4)

    # 5) 640 rows with max_tm=256: multi-chunk fused inner loop (2 x 128-row
    #    chunks per step), 3 grid steps, masked partial tail block.
    x5 = jax.nn.sigmoid(jax.random.normal(ks[8], (5, 128, 128), jnp.float32))
    t5 = (jax.random.uniform(ks[9], (5, 128, 128)) > 0.5).astype(jnp.float32)
    loss5 = jax.block_until_ready(dice_loss(x5, t5, smooth=1.0, max_tm=256))
    ref5 = _ref_dice_loss(x5, t5, smooth=1.0)
    assert jnp.allclose(loss5, ref5, atol=1e-5, rtol=1e-5), (loss5, ref5)

    print("KERNEL_OK")
</pallas_src>

<mosaic_0001>
module attributes {stable_mosaic.version = 11 : i64} {
  func.func @_dice_sums_kernel(%arg0: i32, %arg1: memref<16x128xf32, #tpu.memory_space<vmem>>, %arg2: memref<16x128xf32, #tpu.memory_space<vmem>>, %arg3: memref<1x3xf32, #tpu.memory_space<smem>>, %arg4: memref<3x8x128xf32, #tpu.memory_space<vmem>>) attributes {dimension_semantics = [#tpu.dimension_semantics<arbitrary>], iteration_bounds = array<i64: 1>, scalar_prefetch = 0 : i64, scratch_operands = 1 : i64, tpu.core_type = #tpu.core_type<tc>, window_params = [{transform_indices = @transform_0, window_bounds = array<i64: 16, 128>}, {transform_indices = @transform_1, window_bounds = array<i64: 16, 128>}, {transform_indices = @transform_2, window_bounds = array<i64: 1, 3>}]} {
    %c0_i32 = arith.constant 0 : i32
    %0 = arith.cmpi eq, %arg0, %c0_i32 : i32
    %1 = arith.extui %0 : i1 to i32
    %c0_i32_0 = arith.constant 0 : i32
    %2 = arith.cmpi ne, %1, %c0_i32_0 : i32
    scf.if %2 {
      %cst_24 = arith.constant 0.000000e+00 : f32
      %41 = vector.broadcast %cst_24 : f32 to vector<3x8x128xf32>
      %c0_25 = arith.constant 0 : index
      %c0_26 = arith.constant 0 : index
      %c0_27 = arith.constant 0 : index
      %42 = vector.load %arg4[%c0_25, %c0_26, %c0_27] : memref<3x8x128xf32, #tpu.memory_space<vmem>>, vector<3x8x128xf32>
      tpu.vector_store %arg4[%c0_25, %c0_26, %c0_27], %41 {strides = array<i32>} : memref<3x8x128xf32, #tpu.memory_space<vmem>>, vector<3x8x128xf32>,
    } else {
    }
    %cst = arith.constant 0.000000e+00 : f32
    %3 = vector.broadcast %cst : f32 to vector<8x128xf32>
    %c0_i32_1 = arith.constant 0 : i32
    %c16_i32 = arith.constant 16 : i32
    %4 = arith.muli %c0_i32_1, %c16_i32 : i32
    %5 = tpu.assume_multiple %4, 16 : i32
    %6 = arith.index_cast %5 : i32 to index
    %c0 = arith.constant 0 : index
    %7 = vector.load %arg1[%6, %c0] : memref<16x128xf32, #tpu.memory_space<vmem>>, vector<16x128xf32>
    %8 = arith.index_cast %5 : i32 to index
    %c0_2 = arith.constant 0 : index
    %9 = vector.load %arg2[%8, %c0_2] : memref<16x128xf32, #tpu.memory_space<vmem>>, vector<16x128xf32>
    %10 = arith.mulf %7, %9 : vector<16x128xf32>
    %11 = vector.shape_cast %10 : vector<16x128xf32> to vector<2x8x128xf32>
    %cst_3 = arith.constant dense<0.000000e+00> : vector<8x128xf32>
    %12 = vector.multi_reduction <add>, %11, %cst_3 [0] : vector<2x8x128xf32> to vector<8x128xf32>
    %13 = arith.addf %3, %12 : vector<8x128xf32>
    %14 = vector.shape_cast %7 : vector<16x128xf32> to vector<2x8x128xf32>
    %cst_4 = arith.constant dense<0.000000e+00> : vector<8x128xf32>
    %15 = vector.multi_reduction <add>, %14, %cst_4 [0] : vector<2x8x128xf32> to vector<8x128xf32>
    %16 = arith.addf %3, %15 : vector<8x128xf32>
    %17 = vector.shape_cast %9 : vector<16x128xf32> to vector<2x8x128xf32>
    %cst_5 = arith.constant dense<0.000000e+00> : vector<8x128xf32>
    %18 = vector.multi_reduction <add>, %17, %cst_5 [0] : vector<2x8x128xf32> to vector<8x128xf32>
    %19 = arith.addf %3, %18 : vector<8x128xf32>
    %c1_i32 = arith.constant 1 : i32
    %c0_6 = arith.constant 0 : index
    %c0_7 = arith.constant 0 : index
    %c0_8 = arith.constant 0 : index
    %20 = vector.load %arg4[%c0_6, %c0_7, %c0_8] : memref<3x8x128xf32, #tpu.memory_space<vmem>>, vector<1x8x128xf32>
    %21 = vector.shape_cast %20 : vector<1x8x128xf32> to vector<8x128xf32>
    %22 = arith.addf %21, %13 : vector<8x128xf32>
    %c0_9 = arith.constant 0 : index
    %c0_10 = arith.constant 0 : index
    %c0_11 = arith.constant 0 : index
    %23 = vector.load %arg4[%c0_9, %c0_10, %c0_11] : memref<3x8x128xf32, #tpu.memory_space<vmem>>, vector<1x8x128xf32>
    %24 = vector.shape_cast %23 : vector<1x8x128xf32> to vector<8x128xf32>
    %25 = vector.shape_cast %22 : vector<8x128xf32> to vector<1x8x128xf32>
    tpu.vector_store %arg4[%c0_9, %c0_10, %c0_11], %25 {strides = array<i32>} : memref<3x8x128xf32, #tpu.memory_space<vmem>>, vector<1x8x128xf32>,
    %c1 = arith.constant 1 : index
    %c0_12 = arith.constant 0 : index
    %c0_13 = arith.constant 0 : index
    %26 = vector.load %arg4[%c1, %c0_12, %c0_13] : memref<3x8x128xf32, #tpu.memory_space<vmem>>, vector<1x8x128xf32>
    %27 = vector.shape_cast %26 : vector<1x8x128xf32> to vector<8x128xf32>
    %28 = arith.addf %27, %16 : vector<8x128xf32>
    %c1_14 = arith.constant 1 : index
    %c0_15 = arith.constant 0 : index
    %c0_16 = arith.constant 0 : index
    %29 = vector.load %arg4[%c1_14, %c0_15, %c0_16] : memref<3x8x128xf32, #tpu.memory_space<vmem>>, vector<1x8x128xf32>
    %30 = vector.shape_cast %29 : vector<1x8x128xf32> to vector<8x128xf32>
    %31 = vector.shape_cast %28 : vector<8x128xf32> to vector<1x8x128xf32>
    tpu.vector_store %arg4[%c1_14, %c0_15, %c0_16], %31 {strides = array<i32>} : memref<3x8x128xf32, #tpu.memory_space<vmem>>, vector<1x8x128xf32>,
    %c2 = arith.constant 2 : index
    %c0_17 = arith.constant 0 : index
    %c0_18 = arith.constant 0 : index
    %32 = vector.load %arg4[%c2, %c0_17, %c0_18] : memref<3x8x128xf32, #tpu.memory_space<vmem>>, vector<1x8x128xf32>
    %33 = vector.shape_cast %32 : vector<1x8x128xf32> to vector<8x128xf32>
    %34 = arith.addf %33, %19 : vector<8x128xf32>
    %c2_19 = arith.constant 2 : index
    %c0_20 = arith.constant 0 : index
    %c0_21 = arith.constant 0 : index
    %35 = vector.load %arg4[%c2_19, %c0_20, %c0_21] : memref<3x8x128xf32, #tpu.memory_space<vmem>>, vector<1x8x128xf32>
    %36 = vector.shape_cast %35 : vector<1x8x128xf32> to vector<8x128xf32>
    %37 = vector.shape_cast %34 : vector<8x128xf32> to vector<1x8x128xf32>
    tpu.vector_store %arg4[%c2_19, %c0_20, %c0_21], %37 {strides = array<i32>} : memref<3x8x128xf32, #tpu.memory_space<vmem>>, vector<1x8x128xf32>,
    %c0_i32_22 = arith.constant 0 : i32
    %38 = arith.cmpi eq, %arg0, %c0_i32_22 : i32
    %39 = arith.extui %38 : i1 to i32
    %c0_i32_23 = arith.constant 0 : i32
    %40 = arith.cmpi ne, %39, %c0_i32_23 : i32
    scf.if %40 {
      %c0_24 = arith.constant 0 : index
      %c0_25 = arith.constant 0 : index
      %c0_26 = arith.constant 0 : index
      %41 = vector.load %arg4[%c0_24, %c0_25, %c0_26] : memref<3x8x128xf32, #tpu.memory_space<vmem>>, vector<1x8x128xf32>
      %42 = vector.shape_cast %41 : vector<1x8x128xf32> to vector<8x128xf32>
      %43 = vector.shape_cast %42 : vector<8x128xf32> to vector<1x8x128xf32>
      %cst_27 = arith.constant dense<0.000000e+00> : vector<1xf32>
      %44 = vector.multi_reduction <add>, %43, %cst_27 [1, 2] : vector<1x8x128xf32> to vector<1xf32>
      %45 = vector.shape_cast %44 : vector<1xf32> to vector<1x1x1xf32>
      %46 = vector.extract %45[0, 0, 0] : f32 from vector<1x1x1xf32>
      %c0_28 = arith.constant 0 : index
      %c0_29 = arith.constant 0 : index
      %47 = memref.load %arg3[%c0_28, %c0_29] : memref<1x3xf32, #tpu.memory_space<smem>>
      memref.store %46, %arg3[%c0_28, %c0_29] : memref<1x3xf32, #tpu.memory_space<smem>>
      %c1_30 = arith.constant 1 : index
      %c0_31 = arith.constant 0 : index
      %c0_32 = arith.constant 0 : index
      %48 = vector.load %arg4[%c1_30, %c0_31, %c0_32] : memref<3x8x128xf32, #tpu.memory_space<vmem>>, vector<1x8x128xf32>
      %49 = vector.shape_cast %48 : vector<1x8x128xf32> to vector<8x128xf32>
      %50 = vector.shape_cast %49 : vector<8x128xf32> to vector<1x8x128xf32>
      %cst_33 = arith.constant dense<0.000000e+00> : vector<1xf32>
      %51 = vector.multi_reduction <add>, %50, %cst_33 [1, 2] : vector<1x8x128xf32> to vector<1xf32>
      %52 = vector.shape_cast %51 : vector<1xf32> to vector<1x1x1xf32>
      %53 = vector.extract %52[0, 0, 0] : f32 from vector<1x1x1xf32>
      %c0_34 = arith.constant 0 : index
      %c1_35 = arith.constant 1 : index
      %54 = memref.load %arg3[%c0_34, %c1_35] : memref<1x3xf32, #tpu.memory_space<smem>>
      memref.store %53, %arg3[%c0_34, %c1_35] : memref<1x3xf32, #tpu.memory_space<smem>>
      %c2_36 = arith.constant 2 : index
      %c0_37 = arith.constant 0 : index
      %c0_38 = arith.constant 0 : index
      %55 = vector.load %arg4[%c2_36, %c0_37, %c0_38] : memref<3x8x128xf32, #tpu.memory_space<vmem>>, vector<1x8x128xf32>
      %56 = vector.shape_cast %55 : vector<1x8x128xf32> to vector<8x128xf32>
      %57 = vector.shape_cast %56 : vector<8x128xf32> to vector<1x8x128xf32>
      %cst_39 = arith.constant dense<0.000000e+00> : vector<1xf32>
      %58 = vector.multi_reduction <add>, %57, %cst_39 [1, 2] : vector<1x8x128xf32> to vector<1xf32>
      %59 = vector.shape_cast %58 : vector<1xf32> to vector<1x1x1xf32>
      %60 = vector.extract %59[0, 0, 0] : f32 from vector<1x1x1xf32>
      %c0_40 = arith.constant 0 : index
      %c2_41 = arith.constant 2 : index
      %61 = memref.load %arg3[%c0_40, %c2_41] : memref<1x3xf32, #tpu.memory_space<smem>>
      memref.store %60, %arg3[%c0_40, %c2_41] : memref<1x3xf32, #tpu.memory_space<smem>>
    } else {
    }
    return
  }
  func.func @transform_0(%arg0: i32) -> (i32, i32) {
    %c0_i32 = arith.constant 0 : i32
    %c0_i32_0 = arith.constant 0 : i32
    return %arg0, %c0_i32 : i32, i32
  }
  func.func @transform_1(%arg0: i32) -> (i32, i32) {
    %c0_i32 = arith.constant 0 : i32
    %c0_i32_0 = arith.constant 0 : i32
    return %arg0, %c0_i32 : i32, i32
  }
  func.func @transform_2(%arg0: i32) -> (i32, i32) {
    %c0_i32 = arith.constant 0 : i32
    %c0_i32_0 = arith.constant 0 : i32
    %c0_i32_1 = arith.constant 0 : i32
    return %c0_i32, %c0_i32_0 : i32, i32
  }
}

</mosaic_0001>

<llo_original>
// kernel: tpu_custom_call.1
$region0: #{tpu_custom_call.1}
  #allocation0 [shape = 'u32[]', space=smem, size = 0x4, offset = 0x4, fixed_abs, tag = 'smem constant byte address 0x4 - core index']
  #allocation1 [shape = 'u32[144,128]{1,0:T(1,128)}', space=vmem, size = 0x12000, scoped, tag = 'internal scratch']
  #allocation2 [shape = 'f32[3,8,128]{2,1,0:T(8,128)}', space=vmem, size = 0x3000, scoped, tag = 'scratch operand']
  %s0 = inlined_call_operand.hbm [shape: f32[16,128], index: 0, kind: input, shape index: {}]
  %s1 = inlined_call_operand.hbm [shape: f32[16,128], index: 1, kind: input, shape index: {}]
  %s2 = inlined_call_operand.hbm [shape: f32[1,3], index: 2, kind: output, shape index: {}]
  %s3 = sld [smem:[#allocation0]]
  $region34: #{tpu_custom_call.1} parent=0
    _
  %s5 = ssub.s32 1, %s3
  %s6 = scalar_select 0, %s5, %s3
  $region1: #{tpu_custom_call.1} parent=0
    #allocation3 [shape = 'u8[8192]{0}', space=vmem, size = 0x2000, scoped, tag = 'input window, operand 0, single buffered']
    #allocation4 [shape = 's32[1]{0}', space=sflag, size = 0x4, scoped, tag = 'scoped memory for tpu_custom_call.1']
    #allocation5 [shape = 's32[1]{0}', space=sflag, size = 0x4, scoped, tag = 'scoped memory for tpu_custom_call.1']
    #allocation6 [shape = 'u8[8192]{0}', space=vmem, size = 0x2000, scoped, tag = 'input window, operand 1, single buffered']
    #allocation7 [shape = 's32[1]{0}', space=sflag, size = 0x4, scoped, tag = 'scoped memory for tpu_custom_call.1']
    #allocation8 [shape = 'u8[512]{0}', space=smem, size = 0x200, scoped, tag = 'output window, operand 0, single buffered']
    %7 = vsyncpa [#allocation4], 0
    %8 = vsyncpa [#allocation7], 0
    %9 = vsyncpa [#allocation5], 0
    // Predicated region
    $region2: #{tpu_custom_call.1} parent=1 // pred_check
      _
    $region3: #{tpu_custom_call.1} parent=1 // pred_check_branch
      %11 = sbr.rel (0) target = $region5
    $region4: #{tpu_custom_call.1} parent=1 // pred_region
      %s13 = ssub.s32 256, 256
      %14 = vsyncadd [#allocation4], %s13
      %s15 = sshll.u32 [#allocation3], 4
      %s16 = int_to_ptr.vmem [resolvable:$true] %s15
      %21 = dma.hbm_to_vmem [thread:$0]  %s0, 256, %s16, [#allocation4], 128, 128, 8
    $region5: #{tpu_custom_call.1} parent=1 // pred_fallthru
      _
    // Predicated region
    $region6: #{tpu_custom_call.1} parent=1 // pred_check
      _
    $region7: #{tpu_custom_call.1} parent=1 // pred_check_branch
      %23 = sbr.rel (0) target = $region9
    $region8: #{tpu_custom_call.1} parent=1 // pred_region
      %s25 = ssub.s32 256, 256
      %26 = vsyncadd [#allocation7], %s25
      %s27 = sshll.u32 [#allocation6], 4
      %s28 = int_to_ptr.vmem [resolvable:$true] %s27
      %33 = dma.hbm_to_vmem [thread:$0]  %s1, 256, %s28, [#allocation7], 128, 128, 8
    $region9: #{tpu_custom_call.1} parent=1 // pred_fallthru
      _
    // Predicated region
    $region10: #{tpu_custom_call.1} parent=1 // pred_check
      _
    $region11: #{tpu_custom_call.1} parent=1 // pred_check_branch
      %35 = sbr.rel (0) target = $region13
    $region12: #{tpu_custom_call.1} parent=1 // pred_region
      %36 = dma.done [#allocation4], 256
    $region13: #{tpu_custom_call.1} parent=1 // pred_fallthru
      _
    // Predicated region
    $region14: #{tpu_custom_call.1} parent=1 // pred_check
      _
    $region15: #{tpu_custom_call.1} parent=1 // pred_check_branch
      %38 = sbr.rel (0) target = $region17
    $region16: #{tpu_custom_call.1} parent=1 // pred_region
      %39 = dma.done [#allocation7], 256
    $region17: #{tpu_custom_call.1} parent=1 // pred_fallthru
      _
    %p40 = scmp.eq.s32.totalorder 0, 0
    // Predicated region
    $region18: #{tpu_custom_call.1} parent=1 // pred_check
      %p41 = pneg %p40
    $region19: #{tpu_custom_call.1} parent=1 // pred_check_branch
      %43 = sbr.rel (%p41) target = $region21
    $region20: #{tpu_custom_call.1} parent=1 // pred_region
      %44 = vst [vmem:[#allocation2] sm:$0xff] 0.0
      %45 = vst [vmem:[#allocation2 + $0x8] sm:$0xff] 0.0
      %46 = vst [vmem:[#allocation2 + $0x10] sm:$0xff] 0.0
    $region21: #{tpu_custom_call.1} parent=1 // pred_fallthru
      _
    %v47 = vld [vmem:[#allocation3] sm:$0xff]
    %v48 = vld [vmem:[#allocation3 + $0x8] sm:$0xff]
    %v49 = vld [vmem:[#allocation6] sm:$0xff]
    %v50 = vld [vmem:[#allocation6 + $0x8] sm:$0xff]
    %v51 = vmul.f32 %v47, %v49
    %v52 = vmul.f32 %v48, %v50
    %v53 = vadd.f32 %v51, %v52
    %v54 = vadd.f32 %v53, 0.0
    %v55 = vadd.f32 %v47, %v48
    %v56 = vadd.f32 %v55, 0.0
    %v57 = vadd.f32 %v49, %v50
    %v58 = vadd.f32 %v57, 0.0
    %v59 = vld [vmem:[#allocation2] sm:$0xff]
    %v60 = vadd.f32 %v59, %v54
    %61 = vst [vmem:[#allocation2] sm:$0xff] %v60
    %s62 = scalar_lea.vmem [#allocation2], 8
    %v63 = vld [vmem:[%s62] sm:$0xff]
    %v64 = vadd.f32 %v63, %v56
    %65 = vst [vmem:[%s62] sm:$0xff] %v64
    %s66 = scalar_lea.vmem [#allocation2], 16
    %v67 = vld [vmem:[%s66] sm:$0xff]
    %v68 = vadd.f32 %v67, %v58
    %69 = vst [vmem:[%s66] sm:$0xff] %v68
    // Predicated region
    $region22: #{tpu_custom_call.1} parent=1 // pred_check
      %p70 = pneg %p40
    $region23: #{tpu_custom_call.1} parent=1 // pred_check_branch
      %72 = sbr.rel (%p70) target = $region25
    $region24: #{tpu_custom_call.1} parent=1 // pred_region
      %v73 = vld [vmem:[#allocation2] sm:$0xff]
      %74 = vadd.xlane.f32.xlu0 %v73
      %v75 = vpop.xlane.xlu0 %74
      %v76 = vrot.slane %v75, 4
      %v77 = vadd.f32 %v75, %v76
      %v78 = vrot.slane %v77, 2
      %v79 = vadd.f32 %v77, %v78
      %v80 = vrot.slane %v79, 1
      %v81 = vadd.f32 %v79, %v80
      %s82 = vtos %v81
      %s83 = scalar_lea.smem [#allocation8], 0
      %84 = sst [smem:[%s83]] %s82
      %v85 = vld [vmem:[%s62] sm:$0xff]
      %86 = vadd.xlane.f32.xlu0 %v85
      %v87 = vpop.xlane.xlu0 %86
      %v88 = vrot.slane %v87, 4
      %v89 = vadd.f32 %v87, %v88
      %v90 = vrot.slane %v89, 2
      %v91 = vadd.f32 %v89, %v90
      %v92 = vrot.slane %v91, 1
      %v93 = vadd.f32 %v91, %v92
      %s94 = vtos %v93
      %s95 = scalar_lea.smem [#allocation8], 1
      %96 = sst [smem:[%s95]] %s94
      %v97 = vld [vmem:[%s66] sm:$0xff]
      %98 = vadd.xlane.f32.xlu0 %v97
      %v99 = vpop.xlane.xlu0 %98
      %v100 = vrot.slane %v99, 4
      %v101 = vadd.f32 %v99, %v100
      %v102 = vrot.slane %v101, 2
      %v103 = vadd.f32 %v101, %v102
      %v104 = vrot.slane %v103, 1
      %v105 = vadd.f32 %v103, %v104
      %s106 = vtos %v105
      %s107 = scalar_lea.smem [#allocation8], 2
      %108 = sst [smem:[%s107]] %s106
    $region25: #{tpu_custom_call.1} parent=1 // pred_fallthru
      _
    // Predicated region
    $region26: #{tpu_custom_call.1} parent=1 // pred_check
      _
    $region27: #{tpu_custom_call.1} parent=1 // pred_check_branch
      %110 = sbr.rel (0) target = $region29
    $region28: #{tpu_custom_call.1} parent=1 // pred_region
      %s112 = ssub.s32 16, 16
      %113 = vsyncadd [#allocation5], %s112
      %116 = dma.smem_to_hbm [#allocation8], 16, %s2, [#allocation5]
    $region29: #{tpu_custom_call.1} parent=1 // pred_fallthru
      _
    // Predicated region
    $region30: #{tpu_custom_call.1} parent=1 // pred_check
      _
    $region31: #{tpu_custom_call.1} parent=1 // pred_check_branch
      %118 = sbr.rel (0) target = $region33
    $region32: #{tpu_custom_call.1} parent=1 // pred_region
      %119 = dma.done [#allocation5], 16
    $region33: #{tpu_custom_call.1} parent=1 // pred_fallthru
      _
    %120 = sfence
    %121 = vsyncpa [#allocation4], 1
    %122 = vsyncpa [#allocation7], 1
    %123 = vsyncpa [#allocation5], 1

</llo_original>
